<compile_context>
chip_gen: v7x
topology: tpu7x:2x2x1
jax: 0.10.0
libtpu: 0.0.40
codegen_flags: <defaults>
</compile_context>

<pallas_src>
import jax
import jax.numpy as jnp
from jax.experimental import pallas as pl
from jax.experimental.pallas import tpu as pltpu

PICK_VOCAB = 100
HOUR_VOCAB = 24
PICK_DIM = 8
HOUR_DIM = 4
HIDDEN = 32
K_PAD = 128      # one-hot width: 100 pickup cols + 24 hour cols, padded to 128


def eta_kernel(pick_ref, hour_ref, traf_ref, tbl_ref, w1t_ref, b1_ref,
               w2_ref, b2_ref, o_ref):
    # pick_ref, hour_ref : (1, bt) int32   -- batch on the 128-lane axis
    # traf_ref           : (1, bt) f32
    # tbl_ref            : (HIDDEN, K_PAD) f32  W1-folded tables (VMEM resident)
    # w1t_ref, b1_ref    : (HIDDEN, 1) f32      traffic column of W1, first bias
    # w2_ref             : (1, HIDDEN) f32
    # b2_ref             : (1, 1) f32 in SMEM
    bt = pick_ref.shape[1]
    rows = jax.lax.broadcasted_iota(jnp.int32, (K_PAD, bt), 0)
    hit = jnp.logical_or(rows == pick_ref[...],
                         rows == (hour_ref[...] + PICK_VOCAB))
    onehot = hit.astype(jnp.float32)                                    # (K_PAD, bt)

    # Fused embedding gather + first Linear: a single MXU matmul.
    h = jnp.dot(tbl_ref[...], onehot,
                preferred_element_type=jnp.float32)                     # (HIDDEN, bt)
    h = h + w1t_ref[...] * traf_ref[...] + b1_ref[...]
    h = jnp.maximum(h, 0.0)

    y = jnp.dot(w2_ref[...], h, preferred_element_type=jnp.float32) + b2_ref[0, 0]
    o_ref[...] = y.astype(o_ref.dtype)                                  # (1, bt) lane-dense


def eta_forward(params, pickup_h3, hour_bin, traffic_score, *, b_tile=8192):
    """Pallas implementation of ETAModel.forward.

    pickup_h3:     int32 [B]
    hour_bin:      int32 [B]
    traffic_score: float32 [B]
    returns:       float32 [B, 1]
    """
    B = pickup_h3.shape[0]

    # ---- batch tile on the lane axis (multiple of 128) ----
    bt = max(128, min(b_tile, pl.next_power_of_2(max(B, 1))))
    # v7x megacore: prefer >= 2 tiles so the "parallel" grid axis can shard
    # across both TensorCores for mid/large batches.
    if pl.cdiv(B, bt) < 2 and bt >= 256:
        bt //= 2
    n_tiles = pl.cdiv(B, bt)
    Bp = n_tiles * bt

    hi = jax.lax.Precision.HIGHEST

    # ---- tiny per-call weight prep (no (B, ...) sized HBM traffic here) ----
    w1 = params["w1"].astype(jnp.float32)                                    # (13, 32)
    fold_p = jnp.dot(params["pickup_embedding"].astype(jnp.float32),
                     w1[:PICK_DIM, :], precision=hi)                         # (100, 32)
    fold_h = jnp.dot(params["hour_embedding"].astype(jnp.float32),
                     w1[PICK_DIM:PICK_DIM + HOUR_DIM, :], precision=hi)      # (24, 32)
    tbl_t = jnp.concatenate(
        [fold_p.T, fold_h.T,
         jnp.zeros((HIDDEN, K_PAD - PICK_VOCAB - HOUR_VOCAB), jnp.float32)],
        axis=1)                                                              # (32, 128)
    w1_traf = w1[PICK_DIM + HOUR_DIM, :].reshape(HIDDEN, 1)                  # (32, 1)
    b1 = params["b1"].reshape(HIDDEN, 1).astype(jnp.float32)                 # (32, 1)
    w2_t = params["w2"].T.astype(jnp.float32)                                # (1, 32)
    b2 = params["b2"].reshape(1, 1).astype(jnp.float32)                      # SMEM scalar

    # ---- lane-dense index / traffic streams (zero-padded lanes use valid
    #      in-range index 0 and traffic 0; they are sliced off below) ----
    pad = Bp - B
    pick = jnp.pad(pickup_h3.astype(jnp.int32), (0, pad))[None, :]           # (1, Bp)
    hour = jnp.pad(hour_bin.astype(jnp.int32), (0, pad))[None, :]            # (1, Bp)
    traf = jnp.pad(traffic_score.astype(jnp.float32), (0, pad))[None, :]     # (1, Bp)

    out_t = pl.pallas_call(
        eta_kernel,
        out_shape=jax.ShapeDtypeStruct((1, Bp), jnp.float32),
        grid_spec=pltpu.PrefetchScalarGridSpec(
            num_scalar_prefetch=0,
            grid=(n_tiles,),
            in_specs=[
                pl.BlockSpec((1, bt), lambda i: (0, i)),             # pickup ids
                pl.BlockSpec((1, bt), lambda i: (0, i)),             # hour ids
                pl.BlockSpec((1, bt), lambda i: (0, i)),             # traffic
                pl.BlockSpec((HIDDEN, K_PAD), lambda i: (0, 0)),     # folded tables (resident)
                pl.BlockSpec((HIDDEN, 1), lambda i: (0, 0)),         # W1 traffic column
                pl.BlockSpec((HIDDEN, 1), lambda i: (0, 0)),         # b1
                pl.BlockSpec((1, HIDDEN), lambda i: (0, 0)),         # w2^T
                pl.BlockSpec(memory_space=pltpu.MemorySpace.SMEM),   # b2 scalar
            ],
            out_specs=pl.BlockSpec((1, bt), lambda i: (0, i)),
        ),
        compiler_params=pltpu.CompilerParams(
            dimension_semantics=("parallel",),
            vmem_limit_bytes=32 * 1024 * 1024,
        ),
    )(pick, hour, traf, tbl_t, w1_traf, b1, w2_t, b2)

    return out_t[0, :B][:, None]                                             # (B, 1)


def init_params(key):
    """Deterministic synthetic parameters matching ETAModel.__init__ shapes.

    nn.Embedding(100, 8), nn.Embedding(24, 4),
    nn.Linear(13, 32), nn.Linear(32, 1).
    Linear weights stored as (in, out); the kernel consumes folded copies.
    """
    k = jax.random.split(key, 6)
    return {
        "pickup_embedding": jax.random.normal(k[0], (100, 8), jnp.float32) * 0.1,
        "hour_embedding": jax.random.normal(k[1], (24, 4), jnp.float32) * 0.1,
        "w1": jax.random.normal(k[2], (13, 32), jnp.float32) * 0.1,
        "b1": jax.random.normal(k[3], (1, 32), jnp.float32) * 0.1,
        "w2": jax.random.normal(k[4], (32, 1), jnp.float32) * 0.1,
        "b2": jax.random.normal(k[5], (1, 1), jnp.float32) * 0.1,
    }


def eta_forward_ref(params, pickup_h3, hour_bin, traffic_score):
    """Pure-JAX reference for correctness check."""
    hi = jax.lax.Precision.HIGHEST
    pickup_emb = jnp.take(params["pickup_embedding"], pickup_h3, axis=0)
    hour_emb = jnp.take(params["hour_embedding"], hour_bin, axis=0)
    x = jnp.concatenate(
        [pickup_emb, hour_emb, traffic_score[:, None].astype(jnp.float32)], axis=1)
    h = jnp.maximum(jnp.dot(x, params["w1"], precision=hi) + params["b1"], 0.0)
    return jnp.dot(h, params["w2"], precision=hi) + params["b2"]


if __name__ == "__main__":
    key = jax.random.PRNGKey(0)
    pkey, k_pick, k_hour, k_traf = jax.random.split(key, 4)

    params = init_params(pkey)

    # Small single-tile check.
    B = 8
    pickup_h3 = jax.random.randint(k_pick, (B,), 0, 100, dtype=jnp.int32)
    hour_bin = jax.random.randint(k_hour, (B,), 0, 24, dtype=jnp.int32)
    traffic_score = jax.random.uniform(k_traf, (B,), jnp.float32)
    out = jax.block_until_ready(eta_forward(params, pickup_h3, hour_bin, traffic_score))
    ref = eta_forward_ref(params, pickup_h3, hour_bin, traffic_score)
    assert out.shape == (B, 1), out.shape
    assert jnp.allclose(out, ref, atol=1e-5, rtol=1e-5), (out, ref)

    # Multi-tile check (bt=128, 3 tiles; exercises the batch grid / index_map).
    B2 = 300
    pickup2 = jax.random.randint(k_pick, (B2,), 0, 100, dtype=jnp.int32)
    hour2 = jax.random.randint(k_hour, (B2,), 0, 24, dtype=jnp.int32)
    traf2 = jax.random.uniform(k_traf, (B2,), jnp.float32)
    out2 = jax.block_until_ready(eta_forward(params, pickup2, hour2, traf2, b_tile=128))
    ref2 = eta_forward_ref(params, pickup2, hour2, traf2)
    assert out2.shape == (B2, 1), out2.shape
    assert jnp.allclose(out2, ref2, atol=1e-5, rtol=1e-5)

    # Default-tile check (exercises the n_tiles>=2 megacore split path).
    B3 = 2000
    pickup3 = jax.random.randint(k_pick, (B3,), 0, 100, dtype=jnp.int32)
    hour3 = jax.random.randint(k_hour, (B3,), 0, 24, dtype=jnp.int32)
    traf3 = jax.random.uniform(k_traf, (B3,), jnp.float32)
    out3 = jax.block_until_ready(eta_forward(params, pickup3, hour3, traf3))
    ref3 = eta_forward_ref(params, pickup3, hour3, traf3)
    assert out3.shape == (B3, 1), out3.shape
    assert jnp.allclose(out3, ref3, atol=1e-5, rtol=1e-5)

    print("KERNEL_OK")
</pallas_src>

<mosaic_0001>
module attributes {stable_mosaic.version = 11 : i64} {
  func.func @eta_kernel(%arg0: i32, %arg1: memref<1x128xi32, #tpu.memory_space<vmem>>, %arg2: memref<1x128xi32, #tpu.memory_space<vmem>>, %arg3: memref<1x128xf32, #tpu.memory_space<vmem>>, %arg4: memref<32x128xf32, #tpu.memory_space<vmem>>, %arg5: memref<32x1xf32, #tpu.memory_space<vmem>>, %arg6: memref<32x1xf32, #tpu.memory_space<vmem>>, %arg7: memref<1x32xf32, #tpu.memory_space<vmem>>, %arg8: memref<1x1xf32, #tpu.memory_space<smem>>, %arg9: memref<1x128xf32, #tpu.memory_space<vmem>>) attributes {dimension_semantics = [#tpu.dimension_semantics<parallel>], iteration_bounds = array<i64: 1>, scalar_prefetch = 0 : i64, scratch_operands = 0 : i64, tpu.core_type = #tpu.core_type<tc>, window_params = [{transform_indices = @transform_0, window_bounds = array<i64: 1, 128>}, {transform_indices = @transform_1, window_bounds = array<i64: 1, 128>}, {transform_indices = @transform_2, window_bounds = array<i64: 1, 128>}, {pipeline_mode = #tpu.pipeline_mode<synchronous>, transform_indices = @transform_3, window_bounds = array<i64: 32, 128>}, {pipeline_mode = #tpu.pipeline_mode<synchronous>, transform_indices = @transform_4, window_bounds = array<i64: 32, 1>}, {pipeline_mode = #tpu.pipeline_mode<synchronous>, transform_indices = @transform_5, window_bounds = array<i64: 32, 1>}, {pipeline_mode = #tpu.pipeline_mode<synchronous>, transform_indices = @transform_6, window_bounds = array<i64: 1, 32>}, {transform_indices = @transform_7, window_bounds = array<i64: 1, 1>}, {transform_indices = @transform_8, window_bounds = array<i64: 1, 128>}]} {
    %0 = tpu.iota {dimensions = array<i32: 0>} : vector<128x128xi32>
    %c0 = arith.constant 0 : index
    %c0_0 = arith.constant 0 : index
    %1 = vector.load %arg1[%c0, %c0_0] : memref<1x128xi32, #tpu.memory_space<vmem>>, vector<1x128xi32>
    %2 = vector.broadcast %1 : vector<1x128xi32> to vector<128x128xi32>
    %3 = arith.cmpi eq, %0, %2 : vector<128x128xi32>
    %c0_1 = arith.constant 0 : index
    %c0_2 = arith.constant 0 : index
    %4 = vector.load %arg2[%c0_1, %c0_2] : memref<1x128xi32, #tpu.memory_space<vmem>>, vector<1x128xi32>
    %c100_i32 = arith.constant 100 : i32
    %5 = vector.broadcast %c100_i32 : i32 to vector<1x128xi32>
    %6 = arith.addi %4, %5 : vector<1x128xi32>
    %7 = vector.broadcast %6 : vector<1x128xi32> to vector<128x128xi32>
    %8 = arith.cmpi eq, %0, %7 : vector<128x128xi32>
    %9 = arith.ori %3, %8 : vector<128x128xi1>
    %10 = arith.extui %9 : vector<128x128xi1> to vector<128x128xi32>
    %11 = arith.sitofp %10 : vector<128x128xi32> to vector<128x128xf32>
    %c0_3 = arith.constant 0 : index
    %c0_4 = arith.constant 0 : index
    %12 = vector.load %arg4[%c0_3, %c0_4] : memref<32x128xf32, #tpu.memory_space<vmem>>, vector<32x128xf32>
    %cst = arith.constant dense<0.000000e+00> : vector<32x128xf32>
    %13 = tpu.matmul %12, %11, %cst {dimension_numbers = #tpu.dot_dimension_numbers<[1], [0], [0], [1], [0, 0, 1, 1], [], []>} : vector<32x128xf32>, vector<128x128xf32>, vector<32x128xf32> -> vector<32x128xf32>
    %c0_5 = arith.constant 0 : index
    %c0_6 = arith.constant 0 : index
    %14 = vector.load %arg5[%c0_5, %c0_6] : memref<32x1xf32, #tpu.memory_space<vmem>>, vector<32x1xf32>
    %c0_7 = arith.constant 0 : index
    %c0_8 = arith.constant 0 : index
    %15 = vector.load %arg3[%c0_7, %c0_8] : memref<1x128xf32, #tpu.memory_space<vmem>>, vector<1x128xf32>
    %16 = vector.broadcast %14 : vector<32x1xf32> to vector<32x128xf32>
    %17 = vector.broadcast %15 : vector<1x128xf32> to vector<32x128xf32>
    %18 = arith.mulf %16, %17 : vector<32x128xf32>
    %19 = arith.addf %13, %18 : vector<32x128xf32>
    %c0_9 = arith.constant 0 : index
    %c0_10 = arith.constant 0 : index
    %20 = vector.load %arg6[%c0_9, %c0_10] : memref<32x1xf32, #tpu.memory_space<vmem>>, vector<32x1xf32>
    %21 = vector.broadcast %20 : vector<32x1xf32> to vector<32x128xf32>
    %22 = arith.addf %19, %21 : vector<32x128xf32>
    %cst_11 = arith.constant 0.000000e+00 : f32
    %23 = vector.broadcast %cst_11 : f32 to vector<32x128xf32>
    %24 = arith.maximumf %22, %23 : vector<32x128xf32>
    %c0_12 = arith.constant 0 : index
    %c0_13 = arith.constant 0 : index
    %25 = vector.load %arg7[%c0_12, %c0_13] : memref<1x32xf32, #tpu.memory_space<vmem>>, vector<1x32xf32>
    %cst_14 = arith.constant dense<0.000000e+00> : vector<1x128xf32>
    %26 = tpu.matmul %25, %24, %cst_14 {dimension_numbers = #tpu.dot_dimension_numbers<[1], [0], [0], [1], [0, 0, 1, 1], [], []>} : vector<1x32xf32>, vector<32x128xf32>, vector<1x128xf32> -> vector<1x128xf32>
    %c0_15 = arith.constant 0 : index
    %c0_16 = arith.constant 0 : index
    %27 = memref.load %arg8[%c0_15, %c0_16] : memref<1x1xf32, #tpu.memory_space<smem>>
    %28 = vector.broadcast %27 : f32 to vector<1x128xf32>
    %29 = arith.addf %26, %28 : vector<1x128xf32>
    %c0_17 = arith.constant 0 : index
    %c0_18 = arith.constant 0 : index
    %30 = vector.load %arg9[%c0_17, %c0_18] : memref<1x128xf32, #tpu.memory_space<vmem>>, vector<1x128xf32>
    tpu.vector_store %arg9[%c0_17, %c0_18], %29 {strides = array<i32>} : memref<1x128xf32, #tpu.memory_space<vmem>>, vector<1x128xf32>,
    return
  }
  func.func @transform_0(%arg0: i32) -> (i32, i32) {
    %c0_i32 = arith.constant 0 : i32
    %c0_i32_0 = arith.constant 0 : i32
    return %c0_i32, %arg0 : i32, i32
  }
  func.func @transform_1(%arg0: i32) -> (i32, i32) {
    %c0_i32 = arith.constant 0 : i32
    %c0_i32_0 = arith.constant 0 : i32
    return %c0_i32, %arg0 : i32, i32
  }
  func.func @transform_2(%arg0: i32) -> (i32, i32) {
    %c0_i32 = arith.constant 0 : i32
    %c0_i32_0 = arith.constant 0 : i32
    return %c0_i32, %arg0 : i32, i32
  }
  func.func @transform_3(%arg0: i32) -> (i32, i32) {
    %c0_i32 = arith.constant 0 : i32
    %c0_i32_0 = arith.constant 0 : i32
    %c0_i32_1 = arith.constant 0 : i32
    return %c0_i32, %c0_i32_0 : i32, i32
  }
  func.func @transform_4(%arg0: i32) -> (i32, i32) {
    %c0_i32 = arith.constant 0 : i32
    %c0_i32_0 = arith.constant 0 : i32
    %c0_i32_1 = arith.constant 0 : i32
    return %c0_i32, %c0_i32_0 : i32, i32
  }
  func.func @transform_5(%arg0: i32) -> (i32, i32) {
    %c0_i32 = arith.constant 0 : i32
    %c0_i32_0 = arith.constant 0 : i32
    %c0_i32_1 = arith.constant 0 : i32
    return %c0_i32, %c0_i32_0 : i32, i32
  }
  func.func @transform_6(%arg0: i32) -> (i32, i32) {
    %c0_i32 = arith.constant 0 : i32
    %c0_i32_0 = arith.constant 0 : i32
    %c0_i32_1 = arith.constant 0 : i32
    return %c0_i32, %c0_i32_0 : i32, i32
  }
  func.func @transform_7(%arg0: i32) -> (i32, i32) {
    %c0_i32 = arith.constant 0 : i32
    %c0_i32_0 = arith.constant 0 : i32
    %c0_i32_1 = arith.constant 0 : i32
    return %c0_i32, %c0_i32_0 : i32, i32
  }
  func.func @transform_8(%arg0: i32) -> (i32, i32) {
    %c0_i32 = arith.constant 0 : i32
    %c0_i32_0 = arith.constant 0 : i32
    return %c0_i32, %arg0 : i32, i32
  }
}

</mosaic_0001>

<llo_original>
// kernel: tpu_custom_call.1
$region0: #{tpu_custom_call.1}
  #allocation0 [shape = 'u32[]', space=smem, size = 0x4, offset = 0x4, fixed_abs, tag = 'smem constant byte address 0x4 - core index']
  #allocation1 [shape = 'u32[144,128]{1,0:T(1,128)}', space=vmem, size = 0x12000, scoped, tag = 'internal scratch']
  #allocation2 [shape = 'f32[1,1]{1,0:T(1,128)S(6)}', space=smem, size = 0x200, scoped, tag = 'scoped memory for tpu_custom_call.1']
  %s0 = inlined_call_operand.vmem [shape: s32[1,128], index: 0, kind: input, shape index: {}]
  %s1 = inlined_call_operand.vmem [shape: s32[1,128], index: 1, kind: input, shape index: {}]
  %s2 = inlined_call_operand.vmem [shape: f32[1,128], index: 2, kind: input, shape index: {}]
  %s3 = inlined_call_operand.vmem [shape: f32[32,128], index: 3, kind: input, shape index: {}]
  %s4 = inlined_call_operand.vmem [shape: f32[32,1], index: 4, kind: input, shape index: {}]
  %s5 = inlined_call_operand.vmem [shape: f32[32,1], index: 5, kind: input, shape index: {}]
  %s6 = inlined_call_operand.vmem [shape: f32[1,32], index: 6, kind: input, shape index: {}]
  %s7 = inlined_call_operand.<no memory space> [shape: f32[1,1], index: 7, kind: input, shape index: {}]
  %s8 = inlined_call_operand.hbm [shape: f32[1,128], index: 8, kind: output, shape index: {}]
  %s9 = sld [smem:[#allocation0]]
  $region42: #{tpu_custom_call.1} parent=0
    _
  %s11 = ssub.s32 1, %s9
  %s12 = scalar_select 0, %s11, %s9
  %13 = sst [smem:[#allocation2]] %s7
  $region1: #{tpu_custom_call.1} parent=0
    #allocation3 [shape = 'u8[512]{0}', space=vmem, size = 0x400, scoped, tag = 'output window, operand 0, single buffered']
    #allocation4 [shape = 's32[1]{0}', space=sflag, size = 0x4, scoped, tag = 'scoped memory for tpu_custom_call.1']
    %14 = vsyncpa [#allocation4], 0
    // Predicated region
    $region2: #{tpu_custom_call.1} parent=1 // pred_check
      _
    $region3: #{tpu_custom_call.1} parent=1 // pred_check_branch
      %16 = sbr.rel (0) target = $region5
    $region4: #{tpu_custom_call.1} parent=1 // pred_region
      _
    $region5: #{tpu_custom_call.1} parent=1 // pred_fallthru
      _
    // Predicated region
    $region6: #{tpu_custom_call.1} parent=1 // pred_check
      _
    $region7: #{tpu_custom_call.1} parent=1 // pred_check_branch
      %18 = sbr.rel (0) target = $region9
    $region8: #{tpu_custom_call.1} parent=1 // pred_region
      _
    $region9: #{tpu_custom_call.1} parent=1 // pred_fallthru
      _
    // Predicated region
    $region10: #{tpu_custom_call.1} parent=1 // pred_check
      _
    $region11: #{tpu_custom_call.1} parent=1 // pred_check_branch
      %20 = sbr.rel (0) target = $region13
    $region12: #{tpu_custom_call.1} parent=1 // pred_region
      _
    $region13: #{tpu_custom_call.1} parent=1 // pred_fallthru
      _
    // Predicated region
    $region14: #{tpu_custom_call.1} parent=1 // pred_check
      _
    $region15: #{tpu_custom_call.1} parent=1 // pred_check_branch
      %22 = sbr.rel (0) target = $region17
    $region16: #{tpu_custom_call.1} parent=1 // pred_region
      _
    $region17: #{tpu_custom_call.1} parent=1 // pred_fallthru
      _
    // Predicated region
    $region18: #{tpu_custom_call.1} parent=1 // pred_check
      _
    $region19: #{tpu_custom_call.1} parent=1 // pred_check_branch
      %24 = sbr.rel (0) target = $region21
    $region20: #{tpu_custom_call.1} parent=1 // pred_region
      _
    $region21: #{tpu_custom_call.1} parent=1 // pred_fallthru
      _
    // Predicated region
    $region22: #{tpu_custom_call.1} parent=1 // pred_check
      _
    $region23: #{tpu_custom_call.1} parent=1 // pred_check_branch
      %26 = sbr.rel (0) target = $region25
    $region24: #{tpu_custom_call.1} parent=1 // pred_region
      _
    $region25: #{tpu_custom_call.1} parent=1 // pred_fallthru
      _
    // Predicated region
    $region26: #{tpu_custom_call.1} parent=1 // pred_check
      _
    $region27: #{tpu_custom_call.1} parent=1 // pred_check_branch
      %28 = sbr.rel (0) target = $region29
    $region28: #{tpu_custom_call.1} parent=1 // pred_region
      _
    $region29: #{tpu_custom_call.1} parent=1 // pred_fallthru
      _
    // Predicated region
    $region30: #{tpu_custom_call.1} parent=1 // pred_check
      _
    $region31: #{tpu_custom_call.1} parent=1 // pred_check_branch
      %30 = sbr.rel (0) target = $region33
    $region32: #{tpu_custom_call.1} parent=1 // pred_region
      _
    $region33: #{tpu_custom_call.1} parent=1 // pred_fallthru
      _
    %v31 = vlaneseq
    %v32 = vshrl.u32 %v31, 7
    %v33 = vadd.s32 %v32, 8
    %v34 = vadd.s32 %v32, 16
    %v35 = vadd.s32 %v32, 24
    %v36 = vadd.s32 %v32, 32
    %v37 = vadd.s32 %v32, 40
    %v38 = vadd.s32 %v32, 48
    %v39 = vadd.s32 %v32, 56
    %v40 = vadd.s32 %v32, 64
    %v41 = vadd.s32 %v32, 72
    %v42 = vadd.s32 %v32, 80
    %v43 = vadd.s32 %v32, 88
    %v44 = vadd.s32 %v32, 96
    %v45 = vadd.s32 %v32, 104
    %v46 = vadd.s32 %v32, 112
    %v47 = vadd.s32 %v32, 120
    %v48 = vld [vmem:[%s0] sm:$0x1]
    %v49 = vlaneseq
    %v50 = vshrl.u32 %v49, 7
    %v51 = vsub.s32 0, %v50
    %v52 = vrot.slane %v48, %v51
    %vm53 = vcmp.eq.s32.totalorder %v32, %v52
    %vm54 = vcmp.eq.s32.totalorder %v33, %v52
    %vm55 = vcmp.eq.s32.totalorder %v34, %v52
    %vm56 = vcmp.eq.s32.totalorder %v35, %v52
    %vm57 = vcmp.eq.s32.totalorder %v36, %v52
    %vm58 = vcmp.eq.s32.totalorder %v37, %v52
    %vm59 = vcmp.eq.s32.totalorder %v38, %v52
    %vm60 = vcmp.eq.s32.totalorder %v39, %v52
    %vm61 = vcmp.eq.s32.totalorder %v40, %v52
    %vm62 = vcmp.eq.s32.totalorder %v41, %v52
    %vm63 = vcmp.eq.s32.totalorder %v42, %v52
    %vm64 = vcmp.eq.s32.totalorder %v43, %v52
    %vm65 = vcmp.eq.s32.totalorder %v44, %v52
    %vm66 = vcmp.eq.s32.totalorder %v45, %v52
    %vm67 = vcmp.eq.s32.totalorder %v46, %v52
    %vm68 = vcmp.eq.s32.totalorder %v47, %v52
    %v69 = vld [vmem:[%s1] sm:$0x1]
    %v70 = vadd.s32 %v69, 100
    %v71 = vlaneseq
    %v72 = vshrl.u32 %v71, 7
    %v73 = vsub.s32 0, %v72
    %v74 = vrot.slane %v70, %v73
    %vm75 = vcmp.eq.s32.totalorder %v32, %v74
    %vm76 = vcmp.eq.s32.totalorder %v33, %v74
    %vm77 = vcmp.eq.s32.totalorder %v34, %v74
    %vm78 = vcmp.eq.s32.totalorder %v35, %v74
    %vm79 = vcmp.eq.s32.totalorder %v36, %v74
    %vm80 = vcmp.eq.s32.totalorder %v37, %v74
    %vm81 = vcmp.eq.s32.totalorder %v38, %v74
    %vm82 = vcmp.eq.s32.totalorder %v39, %v74
    %vm83 = vcmp.eq.s32.totalorder %v40, %v74
    %vm84 = vcmp.eq.s32.totalorder %v41, %v74
    %vm85 = vcmp.eq.s32.totalorder %v42, %v74
    %vm86 = vcmp.eq.s32.totalorder %v43, %v74
    %vm87 = vcmp.eq.s32.totalorder %v44, %v74
    %vm88 = vcmp.eq.s32.totalorder %v45, %v74
    %vm89 = vcmp.eq.s32.totalorder %v46, %v74
    %vm90 = vcmp.eq.s32.totalorder %v47, %v74
    %vm91 = vmor %vm53, %vm75
    %vm92 = vmor %vm54, %vm76
    %vm93 = vmor %vm55, %vm77
    %vm94 = vmor %vm56, %vm78
    %vm95 = vmor %vm57, %vm79
    %vm96 = vmor %vm58, %vm80
    %vm97 = vmor %vm59, %vm81
    %vm98 = vmor %vm60, %vm82
    %vm99 = vmor %vm61, %vm83
    %vm100 = vmor %vm62, %vm84
    %vm101 = vmor %vm63, %vm85
    %vm102 = vmor %vm64, %vm86
    %vm103 = vmor %vm65, %vm87
    %vm104 = vmor %vm66, %vm88
    %vm105 = vmor %vm67, %vm89
    %vm106 = vmor %vm68, %vm90
    %v107 = vsel %vm91, 1, 0
    %v108 = vsel %vm92, 1, 0
    %v109 = vsel %vm93, 1, 0
    %v110 = vsel %vm94, 1, 0
    %v111 = vsel %vm95, 1, 0
    %v112 = vsel %vm96, 1, 0
    %v113 = vsel %vm97, 1, 0
    %v114 = vsel %vm98, 1, 0
    %v115 = vsel %vm99, 1, 0
    %v116 = vsel %vm100, 1, 0
    %v117 = vsel %vm101, 1, 0
    %v118 = vsel %vm102, 1, 0
    %v119 = vsel %vm103, 1, 0
    %v120 = vsel %vm104, 1, 0
    %v121 = vsel %vm105, 1, 0
    %v122 = vsel %vm106, 1, 0
    %v123 = vcvt.s32.f32 %v107
    %v124 = vcvt.s32.f32 %v108
    %v125 = vcvt.s32.f32 %v109
    %v126 = vcvt.s32.f32 %v110
    %v127 = vcvt.s32.f32 %v111
    %v128 = vcvt.s32.f32 %v112
    %v129 = vcvt.s32.f32 %v113
    %v130 = vcvt.s32.f32 %v114
    %v131 = vcvt.s32.f32 %v115
    %v132 = vcvt.s32.f32 %v116
    %v133 = vcvt.s32.f32 %v117
    %v134 = vcvt.s32.f32 %v118
    %v135 = vcvt.s32.f32 %v119
    %v136 = vcvt.s32.f32 %v120
    %v137 = vcvt.s32.f32 %v121
    %v138 = vcvt.s32.f32 %v122
    %v139 = vld [vmem:[%s3] sm:$0xff]
    %v140 = vld [vmem:[%s3 + $0x8] sm:$0xff]
    %v141 = vld [vmem:[%s3 + $0x10] sm:$0xff]
    %v142 = vld [vmem:[%s3 + $0x18] sm:$0xff]
    %v143 = vld [vmem:[%s4] sm:$0xff]
    %v144 = vld [vmem:[%s4 + $0x8] sm:$0xff]
    %v145 = vld [vmem:[%s4 + $0x10] sm:$0xff]
    %v146 = vld [vmem:[%s4 + $0x18] sm:$0xff]
    %v147 = vld [vmem:[%s2] sm:$0x1]
    %149 = vset.pattern.permute.xlu0 0
    %150 = vperm.xlu0 %149, %v143
    %v151 = vpop.permute.xlu0 %150
    %154 = vset.pattern.permute.xlu0 0
    %155 = vperm.xlu0 %154, %v144
    %v156 = vpop.permute.xlu0 %155
    %159 = vset.pattern.permute.xlu0 0
    %160 = vperm.xlu0 %159, %v145
    %v161 = vpop.permute.xlu0 %160
    %164 = vset.pattern.permute.xlu0 0
    %165 = vperm.xlu0 %164, %v146
    %v166 = vpop.permute.xlu0 %165
    %v169 = vlaneseq
    %v170 = vshrl.u32 %v169, 7
    %v171 = vsub.s32 0, %v170
    %v172 = vrot.slane %v147, %v171
    %v174 = vmul.f32 %v151, %v172
    %v175 = vmul.f32 %v156, %v172
    %v176 = vmul.f32 %v161, %v172
    %v177 = vmul.f32 %v166, %v172
    %178 = vmatprep.subr.mxu0 0.0
    %179 = vmatpush1.msra.mxu0 %v123
    %180 = vmatprep.subr.mxu0 0.0
    %181 = vmatpush1.msra.mxu0 %v124
    %182 = vmatprep.subr.mxu0 0.0
    %183 = vmatpush1.msra.mxu0 %v125
    %184 = vmatprep.subr.mxu0 0.0
    %185 = vmatpush1.msra.mxu0 %v126
    %186 = vmatprep.subr.mxu0 0.0
    %187 = vmatpush1.msra.mxu0 %v127
    %188 = vmatprep.subr.mxu0 0.0
    %189 = vmatpush1.msra.mxu0 %v128
    %190 = vmatprep.subr.mxu0 0.0
    %191 = vmatpush1.msra.mxu0 %v129
    %192 = vmatprep.subr.mxu0 0.0
    %193 = vmatpush1.msra.mxu0 %v130
    %194 = vmatprep.subr.mxu0 0.0
    %195 = vmatpush1.msra.mxu0 %v131
    %196 = vmatprep.subr.mxu0 0.0
    %197 = vmatpush1.msra.mxu0 %v132
    %198 = vmatprep.subr.mxu0 0.0
    %199 = vmatpush1.msra.mxu0 %v133
    %200 = vmatprep.subr.mxu0 0.0
    %201 = vmatpush1.msra.mxu0 %v134
    %202 = vmatprep.subr.mxu0 0.0
    %203 = vmatpush1.msra.mxu0 %v135
    %204 = vmatprep.subr.mxu0 0.0
    %205 = vmatpush1.msra.mxu0 %v136
    %206 = vmatprep.subr.mxu0 0.0
    %207 = vmatpush1.msra.mxu0 %v137
    %208 = vmatprep.subr.mxu0 0.0
    %209 = vmatpush1.msra.mxu0 %v138
    %210 = vmatprep.subr.mxu0 0.0
    %211 = vmatpush1.msra.mxu0 0.0
    %212 = vmatprep.subr.mxu0 0.0
    %213 = vmatpush1.msra.mxu0 0.0
    %214 = vmatprep.subr.mxu0 0.0
    %215 = vmatpush1.msra.mxu0 0.0
    %216 = vmatprep.subr.mxu0 0.0
    %217 = vmatpush1.msra.mxu0 0.0
    %218 = vmatprep.subr.mxu0 0.0
    %219 = vmatpush1.msra.mxu0 0.0
    %220 = vmatprep.subr.mxu0 0.0
    %221 = vmatpush1.msra.mxu0 0.0
    %222 = vmatprep.subr.mxu0 0.0
    %223 = vmatpush1.msra.mxu0 0.0
    %224 = vmatprep.subr.mxu0 0.0
    %225 = vmatpush1.msra.mxu0 0.0
    %226 = vmatprep.subr.mxu0 0.0
    %227 = vmatpush1.msra.mxu0 0.0
    %228 = vmatprep.subr.mxu0 0.0
    %229 = vmatpush1.msra.mxu0 0.0
    %230 = vmatprep.subr.mxu0 0.0
    %231 = vmatpush1.msra.mxu0 0.0
    %232 = vmatprep.subr.mxu0 0.0
    %233 = vmatpush1.msra.mxu0 0.0
    %234 = vmatprep.subr.mxu0 0.0
    %235 = vmatpush1.msra.mxu0 0.0
    %236 = vmatprep.subr.mxu0 0.0
    %237 = vmatpush1.msra.mxu0 0.0
    %238 = vmatprep.subr.mxu0 0.0
    %239 = vmatpush1.msra.mxu0 0.0
    %240 = vmatprep.subr.mxu0 0.0
    %241 = vmatpush1.msra.mxu0 0.0
    %242 = vmatprep.mubr.f32.mxu0 0.0
    %243 = vmatmul.mubr.f32.gmra.mrb[0].mxu0 %v139
    %v244 = vpop.f32.mrb[0].mxu0
    %v245 = vadd.f32 %v174, %v244
    %v246 = vpop.f32.mrb[0].mxu0
    %247 = vmatprep.mubr.f32.mxu0 0.0
    %248 = vmatmul.mubr.f32.gmra.mrb[0].mxu0 %v140
    %v249 = vpop.f32.mrb[0].mxu0
    %v250 = vadd.f32 %v175, %v249
    %v251 = vpop.f32.mrb[0].mxu0
    %252 = vmatprep.mubr.f32.mxu0 0.0
    %253 = vmatmul.mubr.f32.gmra.mrb[0].mxu0 %v141
    %v254 = vpop.f32.mrb[0].mxu0
    %v255 = vadd.f32 %v176, %v254
    %v256 = vpop.f32.mrb[0].mxu0
    %257 = vmatprep.mubr.f32.mxu0 0.0
    %258 = vmatmul.mubr.f32.gmra.mrb[0].mxu0 %v142
    %v259 = vpop.f32.mrb[0].mxu0
    %v260 = vadd.f32 %v177, %v259
    %v261 = vpop.f32.mrb[0].mxu0
    %262 = vdwg.mxu0
    %v263 = vld [vmem:[%s5] sm:$0xff]
    %v264 = vld [vmem:[%s5 + $0x8] sm:$0xff]
    %v265 = vld [vmem:[%s5 + $0x10] sm:$0xff]
    %v266 = vld [vmem:[%s5 + $0x18] sm:$0xff]
    %268 = vset.pattern.permute.xlu0 0
    %269 = vperm.xlu0 %268, %v263
    %v270 = vpop.permute.xlu0 %269
    %273 = vset.pattern.permute.xlu0 0
    %274 = vperm.xlu0 %273, %v264
    %v275 = vpop.permute.xlu0 %274
    %278 = vset.pattern.permute.xlu0 0
    %279 = vperm.xlu0 %278, %v265
    %v280 = vpop.permute.xlu0 %279
    %283 = vset.pattern.permute.xlu0 0
    %284 = vperm.xlu0 %283, %v266
    %v285 = vpop.permute.xlu0 %284
    %v287 = vadd.f32 %v245, %v270
    %v288 = vadd.f32 %v250, %v275
    %v289 = vadd.f32 %v255, %v280
    %v290 = vadd.f32 %v260, %v285
    %v291 = vmax.f32 %v287, 0.0
    %v292 = vmax.f32 %v288, 0.0
    %v293 = vmax.f32 %v289, 0.0
    %v294 = vmax.f32 %v290, 0.0
    %v295 = vld [vmem:[%s6] sm:$0x1]
    %s296 = sld [smem:[#allocation2]]
    %v297 = vstv %s296
    %vm298 = vcmask 261120
    %v300 = vsel %vm298, %v295, 0
    %302 = vmatprep.subr.mxu0 0.0
    %303 = vmatpush1.msra.mxu0 %v291
    %304 = vmatprep.subr.mxu0 0.0
    %305 = vmatpush1.msra.mxu0 %v292
    %306 = vmatprep.subr.mxu0 0.0
    %307 = vmatpush1.msra.mxu0 %v293
    %308 = vmatprep.subr.mxu0 0.0
    %309 = vmatpush1.msra.mxu0 %v294
    %310 = vmatprep.subr.mxu0 0.0
    %311 = vmatpush1.msra.mxu0 0.0
    %312 = vmatprep.subr.mxu0 0.0
    %313 = vmatpush1.msra.mxu0 0.0
    %314 = vmatprep.subr.mxu0 0.0
    %315 = vmatpush1.msra.mxu0 0.0
    %316 = vmatprep.subr.mxu0 0.0
    %317 = vmatpush1.msra.mxu0 0.0
    %318 = vmatprep.subr.mxu0 0.0
    %319 = vmatpush1.msra.mxu0 0.0
    %320 = vmatprep.subr.mxu0 0.0
    %321 = vmatpush1.msra.mxu0 0.0
    %322 = vmatprep.subr.mxu0 0.0
    %323 = vmatpush1.msra.mxu0 0.0
    %324 = vmatprep.subr.mxu0 0.0
    %325 = vmatpush1.msra.mxu0 0.0
    %326 = vmatprep.subr.mxu0 0.0
    %327 = vmatpush1.msra.mxu0 0.0
    %328 = vmatprep.subr.mxu0 0.0
    %329 = vmatpush1.msra.mxu0 0.0
    %330 = vmatprep.subr.mxu0 0.0
    %331 = vmatpush1.msra.mxu0 0.0
    %332 = vmatprep.subr.mxu0 0.0
    %333 = vmatpush1.msra.mxu0 0.0
    %334 = vmatprep.subr.mxu0 0.0
    %335 = vmatpush1.msra.mxu0 0.0
    %336 = vmatprep.subr.mxu0 0.0
    %337 = vmatpush1.msra.mxu0 0.0
    %338 = vmatprep.subr.mxu0 0.0
    %339 = vmatpush1.msra.mxu0 0.0
    %340 = vmatprep.subr.mxu0 0.0
    %341 = vmatpush1.msra.mxu0 0.0
    %342 = vmatprep.subr.mxu0 0.0
    %343 = vmatpush1.msra.mxu0 0.0
    %344 = vmatprep.subr.mxu0 0.0
    %345 = vmatpush1.msra.mxu0 0.0
    %346 = vmatprep.subr.mxu0 0.0
    %347 = vmatpush1.msra.mxu0 0.0
    %348 = vmatprep.subr.mxu0 0.0
    %349 = vmatpush1.msra.mxu0 0.0
    %350 = vmatprep.subr.mxu0 0.0
    %351 = vmatpush1.msra.mxu0 0.0
    %352 = vmatprep.subr.mxu0 0.0
    %353 = vmatpush1.msra.mxu0 0.0
    %354 = vmatprep.subr.mxu0 0.0
    %355 = vmatpush1.msra.mxu0 0.0
    %356 = vmatprep.subr.mxu0 0.0
    %357 = vmatpush1.msra.mxu0 0.0
    %358 = vmatprep.subr.mxu0 0.0
    %359 = vmatpush1.msra.mxu0 0.0
    %360 = vmatprep.subr.mxu0 0.0
    %361 = vmatpush1.msra.mxu0 0.0
    %362 = vmatprep.subr.mxu0 0.0
    %363 = vmatpush1.msra.mxu0 0.0
    %364 = vmatprep.subr.mxu0 0.0
    %365 = vmatpush1.msra.mxu0 0.0
    %366 = vmatprep.mubr.f32.mxu0 0.0
    %367 = vmatmul.mubr.f32.gmra.mrb[0].mxu0 %v300
    %v368 = vpop.f32.mrb[0].mxu0
    %v369 = vadd.f32 %v297, %v368
    %v370 = vpop.f32.mrb[0].mxu0
    %371 = vdwg.mxu0
    %372 = vst [vmem:[#allocation3] sm:$0x1] %v369
    // Predicated region
    $region34: #{tpu_custom_call.1} parent=1 // pred_check
      _
    $region35: #{tpu_custom_call.1} parent=1 // pred_check_branch
      %374 = sbr.rel (0) target = $region37
    $region36: #{tpu_custom_call.1} parent=1 // pred_region
      %s376 = ssub.s32 16, 16
      %377 = vsyncadd [#allocation4], %s376
      %s379 = sshll.u32 [#allocation3], 4
      %s380 = int_to_ptr.vmem [resolvable:$true] %s379
      %382 = dma.vmem_to_hbm [thread:$0]  %s380, 16, %s8, [#allocation4]
    $region37: #{tpu_custom_call.1} parent=1 // pred_fallthru
      _
    // Predicated region
    $region38: #{tpu_custom_call.1} parent=1 // pred_check
      _
    $region39: #{tpu_custom_call.1} parent=1 // pred_check_branch
      %384 = sbr.rel (0) target = $region41
    $region40: #{tpu_custom_call.1} parent=1 // pred_region
      %385 = dma.done [#allocation4], 16
    $region41: #{tpu_custom_call.1} parent=1 // pred_fallthru
      _
    %386 = vsyncpa [#allocation4], 1

</llo_original>
